<compile_context>
chip_gen: v6e
topology: v6e:2x2x1
jax: 0.10.0
libtpu: 0.0.40
codegen_flags: <defaults>
</compile_context>

<pallas_src>
import jax
import jax.numpy as jnp
from jax.experimental import pallas as pl
from jax.experimental.pallas import tpu as pltpu


_VMEM_TILE_BUDGET = 40 * 1024 * 1024   # per-TC tile budget (fits v7x 64 MiB/TC)
_VMEM_LIMIT = 56 * 1024 * 1024         # > v5e 16 MiB scoped default, < v7x 64 MiB


def _round_up(n, m):
    return ((n + m - 1) // m) * m


def _patch_embed_kernel(x_ref, w_ref, b_ref, o_ref):
    # x_ref: (tm, K_pad) patch tile.  w_ref: (E_pad, K_pad) resident weight in
    # PyTorch (E, K) order -- contraction on dim 1 of both operands, so no
    # host-side weight transpose is ever materialized (the MXU streams the
    # transposed operand natively).  b_ref: (1, E_pad) f32.  o_ref: (tm, E_pad).
    acc = jax.lax.dot_general(
        x_ref[...], w_ref[...],
        dimension_numbers=(((1,), (1,)), ((), ())),
        preferred_element_type=jnp.float32)
    o_ref[...] = (acc + b_ref[...]).astype(o_ref.dtype)


def _choose_tm(M, K_pad, E_pad, compute_bytes, out_bytes, tm_max):
    """Largest row tile that fits the per-TC VMEM budget, preferring an exact
    divisor of M and (for large M) at least two tiles for v7x's two TCs."""
    row_mult = 16 if compute_bytes < 4 else 8           # bf16 packs 2 rows/sublane
    resident = E_pad * K_pad * compute_bytes + E_pad * 4            # Buffered(1)
    per_row = 2 * K_pad * compute_bytes + 2 * E_pad * out_bytes     # dbl-buffered
    budget = max(_VMEM_TILE_BUDGET - resident, row_mult * per_row)
    tm_fit = max(row_mult, (budget // per_row) // row_mult * row_mult)
    tm = min(max(tm_max // row_mult, 1) * row_mult, tm_fit, _round_up(M, row_mult))
    tm = max(tm, row_mult)
    # Prefer a tile that divides M exactly: skips the jnp.pad of the patches and
    # the post-kernel out[:M] slice (two extra HBM passes on a mem-bound op).
    if M > 0 and M % row_mult == 0:
        for cand in range(tm, row_mult - 1, -row_mult):
            if M % cand == 0:
                if 2 * cand >= tm:       # don't shrink the tile below half
                    tm = cand
                break
    # v7x: the single "parallel" grid axis feeds the two TensorCores -- keep at
    # least 2 tiles once M is big enough for the split to be worthwhile.
    if M >= 512 and _round_up(M, tm) // tm < 2:
        tm = _round_up((M + 1) // 2, row_mult)
    return tm


def patch_embed(x, weight, bias, patch_size, *, compute_dtype=None, tm_max=1024):
    """EVA-ViT PatchEmbed forward.

    x: (B, C, H, W) NCHW.  weight: (E, C, ph, pw) (PyTorch Conv2d layout).
    bias: (E,).  Returns (B, num_patches, E), i.e.
    `proj(x).flatten(2).transpose(1, 2)`.
    """
    B, C, H, W = x.shape
    E = weight.shape[0]
    ph, pw = patch_size
    Hp, Wp = H // ph, W // pw            # stride==kernel conv drops ragged edges
    num_patches = Hp * Wp
    K = C * ph * pw
    M = B * num_patches
    out_dtype = x.dtype

    if compute_dtype is None:
        # bf16 MXU passes (f32 accumulation) on v5e/v6e/v7x: 2x dot rate and
        # half the patch-tile DMA bytes.
        compute_dtype = jnp.bfloat16 if x.dtype == jnp.float32 else x.dtype
    compute_bytes = jnp.dtype(compute_dtype).itemsize
    out_bytes = jnp.dtype(out_dtype).itemsize

    # ---- glue: extract non-overlapping patches, flattened in (C, kh, kw) order.
    # Cast first so the transpose copy moves compute_dtype (not f32) bytes.
    # TODO(synk): fold this extraction into the pallas_call input DMA (header).
    xc = x.astype(compute_dtype)
    patches = xc.reshape(B, C, Hp, ph, Wp, pw)
    patches = jnp.transpose(patches, (0, 2, 4, 1, 3, 5)).reshape(M, K)

    # Weight stays in PyTorch (E, K) order -- contraction happens on dim 1 of
    # both operands in-kernel, so no host-side transpose is materialized.
    w_mat = weight.reshape(E, K).astype(compute_dtype)
    b_mat = bias.reshape(1, E).astype(jnp.float32)      # bias add stays in f32

    # ---- pad: K (contraction) and E (output lanes) to multiples of 128,
    # M to a multiple of the row tile.
    K_pad = _round_up(K, 128)
    E_pad = _round_up(E, 128)
    if K_pad != K:
        patches = jnp.pad(patches, ((0, 0), (0, K_pad - K)))
        w_mat = jnp.pad(w_mat, ((0, 0), (0, K_pad - K)))
    if E_pad != E:
        w_mat = jnp.pad(w_mat, ((0, E_pad - E), (0, 0)))
        b_mat = jnp.pad(b_mat, ((0, 0), (0, E_pad - E)))

    tm = _choose_tm(M, K_pad, E_pad, compute_bytes, out_bytes, tm_max)
    M_pad = _round_up(M, tm)
    if M_pad != M:
        patches = jnp.pad(patches, ((0, M_pad - M), (0, 0)))

    grid = (M_pad // tm,)

    cost = pl.CostEstimate(
        flops=2 * M * K * E,
        transcendentals=0,
        bytes_accessed=(M * K * compute_bytes       # patch tiles
                        + E * K * compute_bytes     # weight (read once)
                        + E * 4                     # bias (f32)
                        + M * E * out_bytes))       # output

    out = pl.pallas_call(
        _patch_embed_kernel,
        out_shape=jax.ShapeDtypeStruct((M_pad, E_pad), out_dtype),
        grid_spec=pltpu.PrefetchScalarGridSpec(
            num_scalar_prefetch=0,
            grid=grid,
            in_specs=[
                # Patch tiles stream (double-buffered by the pipeline).
                pl.BlockSpec((tm, K_pad), lambda i: (i, 0)),
                # Resident weight / bias: constant index_map -> single buffer.
                pl.BlockSpec((E_pad, K_pad), lambda i: (0, 0),
                             pipeline_mode=pl.Buffered(1)),
                pl.BlockSpec((1, E_pad), lambda i: (0, 0),
                             pipeline_mode=pl.Buffered(1)),
            ],
            out_specs=pl.BlockSpec((tm, E_pad), lambda i: (i, 0)),
        ),
        compiler_params=pltpu.CompilerParams(
            # Independent M tiles -> shard across v7x's two TensorCores.
            dimension_semantics=("parallel",),
            # Above v5e's 16 MiB scoped default, below v7x's 64 MiB/TC physical.
            vmem_limit_bytes=_VMEM_LIMIT,
            # Let XLA fuse the patch-extraction transpose / weight+bias pads
            # into the kernel's input path instead of materializing them in HBM.
            allow_input_fusion=[True, True, True],
        ),
        cost_estimate=cost,
    )(patches, w_mat, b_mat)

    if M_pad != M or E_pad != E:
        out = out[:M, :E]
    return out.reshape(B, num_patches, E)


if __name__ == "__main__":
    # Small shapes consistent with the module: img 16x16, patch 8, 4 chans, dim 32.
    B, C, H, W = 2, 4, 16, 16
    patch = (8, 8)
    embed_dim = 32

    key = jax.random.PRNGKey(0)
    kx, kw, kb = jax.random.split(key, 3)
    x = jax.random.normal(kx, (B, C, H, W), dtype=jnp.float32)
    weight = jax.random.normal(kw, (embed_dim, C, patch[0], patch[1]),
                               dtype=jnp.float32) * 0.02
    bias = jax.random.normal(kb, (embed_dim,), dtype=jnp.float32) * 0.02

    # Reference: lax.conv == nn.Conv2d(stride=kernel); highest precision so the
    # reference itself is not bf16-truncated by TPU default matmul precision.
    ref = jax.lax.conv_general_dilated(
        x, weight, window_strides=patch, padding="VALID",
        dimension_numbers=("NCHW", "OIHW", "NCHW"),
        precision=jax.lax.Precision.HIGHEST)
    ref = ref.reshape(B, embed_dim, -1).transpose(0, 2, 1) + bias.reshape(1, 1, -1)

    num_patches = (H // patch[0]) * (W // patch[1])

    # Default path: bf16 MXU compute, f32 accumulation.
    fwd = jax.jit(lambda a, w, b: patch_embed(a, w, b, patch))
    out = jax.block_until_ready(fwd(x, weight, bias))
    assert out.shape == (B, num_patches, embed_dim)
    assert out.dtype == x.dtype
    assert jnp.allclose(out, ref, atol=5e-2, rtol=5e-2)

    # Full-f32 compute path (tighter tolerance).
    fwd_f32 = jax.jit(
        lambda a, w, b: patch_embed(a, w, b, patch, compute_dtype=jnp.float32))
    out_f32 = jax.block_until_ready(fwd_f32(x, weight, bias))
    assert jnp.allclose(out_f32, ref, atol=5e-3, rtol=5e-3)

    print("KERNEL_OK")
</pallas_src>

<mosaic_0001>
module attributes {stable_mosaic.version = 11 : i64} {
  func.func @_patch_embed_kernel(%arg0: i32, %arg1: memref<16x256xbf16, #tpu.memory_space<vmem>>, %arg2: memref<128x256xbf16, #tpu.memory_space<vmem>>, %arg3: memref<1x128xf32, #tpu.memory_space<vmem>>, %arg4: memref<16x128xf32, #tpu.memory_space<vmem>>) attributes {dimension_semantics = [#tpu.dimension_semantics<parallel>], iteration_bounds = array<i64: 1>, scalar_prefetch = 0 : i64, scratch_operands = 0 : i64, tpu.core_type = #tpu.core_type<tc>, window_params = [{transform_indices = @transform_0, window_bounds = array<i64: 16, 256>}, {pipeline_mode = #tpu.pipeline_mode<synchronous>, transform_indices = @transform_1, window_bounds = array<i64: 128, 256>}, {pipeline_mode = #tpu.pipeline_mode<synchronous>, transform_indices = @transform_2, window_bounds = array<i64: 1, 128>}, {transform_indices = @transform_3, window_bounds = array<i64: 16, 128>}]} {
    %c0 = arith.constant 0 : index
    %c0_0 = arith.constant 0 : index
    %0 = vector.load %arg1[%c0, %c0_0] : memref<16x256xbf16, #tpu.memory_space<vmem>>, vector<16x256xbf16>
    %c0_1 = arith.constant 0 : index
    %c0_2 = arith.constant 0 : index
    %1 = vector.load %arg2[%c0_1, %c0_2] : memref<128x256xbf16, #tpu.memory_space<vmem>>, vector<128x256xbf16>
    %cst = arith.constant dense<0.000000e+00> : vector<16x128xf32>
    %2 = tpu.matmul %0, %1, %cst {dimension_numbers = #tpu.dot_dimension_numbers<[1], [1], [0], [0], [0, 0, 1, 0], [], []>} : vector<16x256xbf16>, vector<128x256xbf16>, vector<16x128xf32> -> vector<16x128xf32>
    %c0_3 = arith.constant 0 : index
    %c0_4 = arith.constant 0 : index
    %3 = vector.load %arg3[%c0_3, %c0_4] : memref<1x128xf32, #tpu.memory_space<vmem>>, vector<1x128xf32>
    %4 = vector.broadcast %3 : vector<1x128xf32> to vector<16x128xf32>
    %5 = arith.addf %2, %4 : vector<16x128xf32>
    %c0_5 = arith.constant 0 : index
    %c0_6 = arith.constant 0 : index
    %6 = vector.load %arg4[%c0_5, %c0_6] : memref<16x128xf32, #tpu.memory_space<vmem>>, vector<16x128xf32>
    tpu.vector_store %arg4[%c0_5, %c0_6], %5 {strides = array<i32>} : memref<16x128xf32, #tpu.memory_space<vmem>>, vector<16x128xf32>,
    return
  }
  func.func @transform_0(%arg0: i32) -> (i32, i32) {
    %c0_i32 = arith.constant 0 : i32
    %c0_i32_0 = arith.constant 0 : i32
    return %arg0, %c0_i32 : i32, i32
  }
  func.func @transform_1(%arg0: i32) -> (i32, i32) {
    %c0_i32 = arith.constant 0 : i32
    %c0_i32_0 = arith.constant 0 : i32
    %c0_i32_1 = arith.constant 0 : i32
    return %c0_i32, %c0_i32_0 : i32, i32
  }
  func.func @transform_2(%arg0: i32) -> (i32, i32) {
    %c0_i32 = arith.constant 0 : i32
    %c0_i32_0 = arith.constant 0 : i32
    %c0_i32_1 = arith.constant 0 : i32
    return %c0_i32, %c0_i32_0 : i32, i32
  }
  func.func @transform_3(%arg0: i32) -> (i32, i32) {
    %c0_i32 = arith.constant 0 : i32
    %c0_i32_0 = arith.constant 0 : i32
    return %arg0, %c0_i32 : i32, i32
  }
}

</mosaic_0001>

<llo_original>
// kernel: _lambda_.2
$region0: #{_lambda_.2}
  #allocation0 [shape = 'u32[]', space=smem, size = 0x4, offset = 0x4, fixed_abs, tag = 'smem constant byte address 0x4 - core index']
  #allocation1 [shape = 'u32[144,128]{1,0:T(1,128)}', space=vmem, size = 0x12000, scoped, tag = 'internal scratch']
  #allocation2 [shape = 'u32[2048]{0}', space=vmem, size = 0x2000, scoped, tag = 'scoped memory for _lambda_.2']
  #allocation3 [shape = 'u32[2048]{0}', space=vmem, size = 0x2000, scoped, tag = 'scoped memory for _lambda_.2']
  #allocation4 [shape = 'u32[2048]{0}', space=vmem, size = 0x2000, scoped, tag = 'scoped memory for _lambda_.2']
  #allocation5 [shape = 'u32[2048]{0}', space=vmem, size = 0x2000, scoped, tag = 'scoped memory for _lambda_.2']
  #allocation6 [shape = 'u32[2048]{0}', space=vmem, size = 0x2000, scoped, tag = 'scoped memory for _lambda_.2']
  #allocation7 [shape = 'u32[2048]{0}', space=vmem, size = 0x2000, scoped, tag = 'scoped memory for _lambda_.2']
  #allocation8 [shape = 'u32[2048]{0}', space=vmem, size = 0x2000, scoped, tag = 'scoped memory for _lambda_.2']
  #allocation9 [shape = 'u32[2048]{0}', space=vmem, size = 0x2000, scoped, tag = 'scoped memory for _lambda_.2']
  #allocation10 [shape = 'u32[2048]{0}', space=vmem, size = 0x2000, scoped, tag = 'scoped memory for _lambda_.2']
  #allocation11 [shape = 'u32[2048]{0}', space=vmem, size = 0x2000, scoped, tag = 'scoped memory for _lambda_.2']
  #allocation12 [shape = 'u32[2048]{0}', space=vmem, size = 0x2000, scoped, tag = 'scoped memory for _lambda_.2']
  #allocation13 [shape = 'u32[2048]{0}', space=vmem, size = 0x2000, scoped, tag = 'scoped memory for _lambda_.2']
  #allocation14 [shape = 'u32[2048]{0}', space=vmem, size = 0x2000, scoped, tag = 'scoped memory for _lambda_.2']
  #allocation15 [shape = 'u32[2048]{0}', space=vmem, size = 0x2000, scoped, tag = 'scoped memory for _lambda_.2']
  #allocation16 [shape = 'u32[2048]{0}', space=vmem, size = 0x2000, scoped, tag = 'scoped memory for _lambda_.2']
  %s0 = inlined_call_operand.vmem [shape: bf16[32,256], index: 0, kind: input, shape index: {}]
  %s1 = inlined_call_operand.<no memory space> [shape: bf16[], index: 1, kind: input, shape index: {}]
  %s2 = inlined_call_operand.vmem [shape: bf16[8,256], index: 2, kind: input, shape index: {}]
  %s3 = inlined_call_operand.vmem [shape: f32[1,32], index: 3, kind: input, shape index: {}]
  %s4 = inlined_call_operand.<no memory space> [shape: f32[], index: 4, kind: input, shape index: {}]
  %s5 = inlined_call_operand.vmem [shape: f32[16,128], index: 5, kind: output, shape index: {}]
  %s6 = sld [smem:[#allocation0]]
  $region22: #{_lambda_.2} parent=0
    _
  %s8 = ssub.s32 1, %s6
  %s9 = scalar_select 0, %s8, %s6
  %v10 = vstv %s1
  %v11 = vunpack.i.l.bf16 %v10
  %v13 = vunpack.i.h.bf16 %v10
  %v15 = vstv %s1
  %v16 = vunpack.i.l.bf16 %v15
  %v18 = vunpack.i.h.bf16 %v15
  %v20 = vstv %s4
  $region1: #{_lambda_.2} parent=0
    #allocation17 [shape = 'u8[8192]{0}', space=vmem, size = 0x2000, dematerialized = true, scoped, tag = 'FusionAdapter Buffer %fusion.2 = bf16[16,256]{1,0:T(8,128)(2,1)} fusion(%param_2.3, %param_1.5), kind=kLoop, calls=%fused_computation.3.clone, metadata={op_name="jit(<lambda>)/jit(_pad)/pad" stack_frame_id=16}']
    #allocation18 [shape = 'u8[65536]{0}', space=vmem, size = 0x10000, dematerialized = true, scoped, tag = 'FusionAdapter Buffer %fusion.1 = bf16[128,256]{1,0:T(8,128)(2,1)} fusion(%param_0.6, %param_1.5), kind=kLoop, calls=%fused_computation.2.clone, metadata={op_name="jit(<lambda>)/jit(_pad)/pad" stack_frame_id=14}']
    #allocation19 [shape = 'u8[512]{0}', space=vmem, size = 0x400, dematerialized = true, scoped, tag = 'FusionAdapter Buffer %fusion.3 = f32[1,128]{1,0:T(1,128)} fusion(%param_3.2, %param_4), kind=kLoop, calls=%fused_computation.4.clone, metadata={op_name="jit(<lambda>)/jit(_pad)/pad" stack_frame_id=15}']
    // Predicated region
    $region2: #{_lambda_.2} parent=1 // pred_check
      _
    $region3: #{_lambda_.2} parent=1 // pred_check_branch
      %22 = sbr.rel (0) target = $region5
    $region4: #{_lambda_.2} parent=1 // pred_region
      _
    $region5: #{_lambda_.2} parent=1 // pred_fallthru
      _
    // Predicated region
    $region6: #{_lambda_.2} parent=1 // pred_check
      _
    $region7: #{_lambda_.2} parent=1 // pred_check_branch
      %24 = sbr.rel (0) target = $region9
    $region8: #{_lambda_.2} parent=1 // pred_region
      _
    $region9: #{_lambda_.2} parent=1 // pred_fallthru
      _
    // Predicated region
    $region10: #{_lambda_.2} parent=1 // pred_check
      _
    $region11: #{_lambda_.2} parent=1 // pred_check_branch
      %26 = sbr.rel (0) target = $region13
    $region12: #{_lambda_.2} parent=1 // pred_region
      _
    $region13: #{_lambda_.2} parent=1 // pred_fallthru
      _
    %s28 = sor.u32 255, 127
    %s29 = sand.u32 %s28, 85
    %s30 = sshrl.u32 %s29, 1
    %s31 = sor.u32 %s29, %s30
    %s32 = sand.u32 51, %s31
    %s33 = sshrl.u32 %s32, 2
    %s34 = sor.u32 %s32, %s33
    %s35 = sand.u32 15, %s34
    %v36 = vld [vmem:[%s2] sm:%s35]
    %v37 = vunpack.c.l.bf16 %v36
    %v38 = vunpack.c.h.bf16 %v36
    %v39 = vpack.c.bf16 0.0, %v37
    %s41 = ssub.s32 16, 1
    %42 = vst [vmem:[#allocation17] sm:%s41] %v39
    %s43 = scalar_lea.vmem %s2, 4
    %s45 = sor.u32 255, 127
    %s46 = sand.u32 %s45, 85
    %s47 = sshrl.u32 %s46, 1
    %s48 = sor.u32 %s46, %s47
    %s49 = sand.u32 51, %s48
    %s50 = sshrl.u32 %s49, 2
    %s51 = sor.u32 %s49, %s50
    %s52 = sand.u32 15, %s51
    %v53 = vld [vmem:[%s43] sm:%s52]
    %v54 = vunpack.c.l.bf16 %v53
    %v55 = vunpack.c.h.bf16 %v53
    %s56 = scalar_lea.vmem [#allocation17], 4
    %v57 = vpack.c.bf16 0.0, %v54
    %s59 = ssub.s32 16, 1
    %60 = vst [vmem:[%s56] sm:%s59] %v57
    %s61 = scalar_lea.vmem [#allocation17], 8
    %v62 = vpack.c.bf16 0.0, %v11
    %s64 = ssub.s32 16, 1
    %65 = vst [vmem:[%s61] sm:%s64] %v62
    %s66 = scalar_lea.vmem [#allocation17], 12
    %v67 = vpack.c.bf16 0.0, %v11
    %s69 = ssub.s32 16, 1
    %70 = vst [vmem:[%s66] sm:%s69] %v67
    %s72 = sor.u32 255, 127
    %s73 = sand.u32 %s72, 85
    %s74 = sshrl.u32 %s73, 1
    %s75 = sor.u32 %s73, %s74
    %s76 = sand.u32 51, %s75
    %s77 = sshrl.u32 %s76, 2
    %s78 = sor.u32 %s76, %s77
    %s79 = sand.u32 15, %s78
    %v80 = vld [vmem:[%s0] sm:%s79]
    %v81 = vunpack.c.l.bf16 %v80
    %v82 = vunpack.c.h.bf16 %v80
    %v83 = vpack.c.bf16 0.0, %v81
    %s85 = ssub.s32 16, 1
    %86 = vst [vmem:[#allocation18] sm:%s85] %v83
    %s87 = scalar_lea.vmem %s0, 4
    %s89 = sor.u32 255, 127
    %s90 = sand.u32 %s89, 85
    %s91 = sshrl.u32 %s90, 1
    %s92 = sor.u32 %s90, %s91
    %s93 = sand.u32 51, %s92
    %s94 = sshrl.u32 %s93, 2
    %s95 = sor.u32 %s93, %s94
    %s96 = sand.u32 15, %s95
    %v97 = vld [vmem:[%s87] sm:%s96]
    %v98 = vunpack.c.l.bf16 %v97
    %v99 = vunpack.c.h.bf16 %v97
    %s100 = scalar_lea.vmem [#allocation18], 4
    %v101 = vpack.c.bf16 0.0, %v98
    %s103 = ssub.s32 16, 1
    %104 = vst [vmem:[%s100] sm:%s103] %v101
    %s105 = scalar_lea.vmem %s0, 8
    %s107 = sor.u32 255, 127
    %s108 = sand.u32 %s107, 85
    %s109 = sshrl.u32 %s108, 1
    %s110 = sor.u32 %s108, %s109
    %s111 = sand.u32 51, %s110
    %s112 = sshrl.u32 %s111, 2
    %s113 = sor.u32 %s111, %s112
    %s114 = sand.u32 15, %s113
    %v115 = vld [vmem:[%s105] sm:%s114]
    %v116 = vunpack.c.l.bf16 %v115
    %v117 = vunpack.c.h.bf16 %v115
    %s118 = scalar_lea.vmem [#allocation18], 8
    %v119 = vpack.c.bf16 0.0, %v116
    %s121 = ssub.s32 16, 1
    %122 = vst [vmem:[%s118] sm:%s121] %v119
    %s123 = scalar_lea.vmem %s0, 12
    %s125 = sor.u32 255, 127
    %s126 = sand.u32 %s125, 85
    %s127 = sshrl.u32 %s126, 1
    %s128 = sor.u32 %s126, %s127
    %s129 = sand.u32 51, %s128
    %s130 = sshrl.u32 %s129, 2
    %s131 = sor.u32 %s129, %s130
    %s132 = sand.u32 15, %s131
    %v133 = vld [vmem:[%s123] sm:%s132]
    %v134 = vunpack.c.l.bf16 %v133
    %v135 = vunpack.c.h.bf16 %v133
    %s136 = scalar_lea.vmem [#allocation18], 12
    %v137 = vpack.c.bf16 0.0, %v134
    %s139 = ssub.s32 16, 1
    %140 = vst [vmem:[%s136] sm:%s139] %v137
    %s141 = scalar_lea.vmem %s0, 16
    %s143 = sor.u32 255, 127
    %s144 = sand.u32 %s143, 85
    %s145 = sshrl.u32 %s144, 1
    %s146 = sor.u32 %s144, %s145
    %s147 = sand.u32 51, %s146
    %s148 = sshrl.u32 %s147, 2
    %s149 = sor.u32 %s147, %s148
    %s150 = sand.u32 15, %s149
    %v151 = vld [vmem:[%s141] sm:%s150]
    %v152 = vunpack.c.l.bf16 %v151
    %v153 = vunpack.c.h.bf16 %v151
    %s154 = scalar_lea.vmem [#allocation18], 16
    %v155 = vpack.c.bf16 0.0, %v152
    %s157 = ssub.s32 16, 1
    %158 = vst [vmem:[%s154] sm:%s157] %v155
    %s159 = scalar_lea.vmem %s0, 20
    %s161 = sor.u32 255, 127
    %s162 = sand.u32 %s161, 85
    %s163 = sshrl.u32 %s162, 1
    %s164 = sor.u32 %s162, %s163
    %s165 = sand.u32 51, %s164
    %s166 = sshrl.u32 %s165, 2
    %s167 = sor.u32 %s165, %s166
    %s168 = sand.u32 15, %s167
    %v169 = vld [vmem:[%s159] sm:%s168]
    %v170 = vunpack.c.l.bf16 %v169
    %v171 = vunpack.c.h.bf16 %v169
    %s172 = scalar_lea.vmem [#allocation18], 20
    %v173 = vpack.c.bf16 0.0, %v170
    %s175 = ssub.s32 16, 1
    %176 = vst [vmem:[%s172] sm:%s175] %v173
    %s177 = scalar_lea.vmem %s0, 24
    %s179 = sor.u32 255, 127
    %s180 = sand.u32 %s179, 85
    %s181 = sshrl.u32 %s180, 1
    %s182 = sor.u32 %s180, %s181
    %s183 = sand.u32 51, %s182
    %s184 = sshrl.u32 %s183, 2
    %s185 = sor.u32 %s183, %s184
    %s186 = sand.u32 15, %s185
    %v187 = vld [vmem:[%s177] sm:%s186]
    %v188 = vunpack.c.l.bf16 %v187
    %v189 = vunpack.c.h.bf16 %v187
    %s190 = scalar_lea.vmem [#allocation18], 24
    %v191 = vpack.c.bf16 0.0, %v188
    %s193 = ssub.s32 16, 1
    %194 = vst [vmem:[%s190] sm:%s193] %v191
    %s195 = scalar_lea.vmem %s0, 28
    %s197 = sor.u32 255, 127
    %s198 = sand.u32 %s197, 85
    %s199 = sshrl.u32 %s198, 1
    %s200 = sor.u32 %s198, %s199
    %s201 = sand.u32 51, %s200
    %s202 = sshrl.u32 %s201, 2
    %s203 = sor.u32 %s201, %s202
    %s204 = sand.u32 15, %s203
    %v205 = vld [vmem:[%s195] sm:%s204]
    %v206 = vunpack.c.l.bf16 %v205
    %v207 = vunpack.c.h.bf16 %v205
    %s208 = scalar_lea.vmem [#allocation18], 28
    %v209 = vpack.c.bf16 0.0, %v206
    %s211 = ssub.s32 16, 1
    %212 = vst [vmem:[%s208] sm:%s211] %v209
    %s213 = scalar_lea.vmem [#allocation18], 32
    %v214 = vpack.c.bf16 0.0, %v16
    %s216 = ssub.s32 16, 1
    %217 = vst [vmem:[%s213] sm:%s216] %v214
    %s218 = scalar_lea.vmem [#allocation18], 36
    %v219 = vpack.c.bf16 0.0, %v16
    %s221 = ssub.s32 16, 1
    %222 = vst [vmem:[%s218] sm:%s221] %v219
    %s223 = scalar_lea.vmem [#allocation18], 40
    %v224 = vpack.c.bf16 0.0, %v16
    %s226 = ssub.s32 16, 1
    %227 = vst [vmem:[%s223] sm:%s226] %v224
    %s228 = scalar_lea.vmem [#allocation18], 44
    %v229 = vpack.c.bf16 0.0, %v16
    %s231 = ssub.s32 16, 1
    %232 = vst [vmem:[%s228] sm:%s231] %v229
    %s233 = scalar_lea.vmem [#allocation18], 48
    %v234 = vpack.c.bf16 0.0, %v16
    %s236 = ssub.s32 16, 1
    %237 = vst [vmem:[%s233] sm:%s236] %v234
    %s238 = scalar_lea.vmem [#allocation18], 52
    %v239 = vpack.c.bf16 0.0, %v16
    %s241 = ssub.s32 16, 1
    %242 = vst [vmem:[%s238] sm:%s241] %v239
    %s243 = scalar_lea.vmem [#allocation18], 56
    %v244 = vpack.c.bf16 0.0, %v16
    %s246 = ssub.s32 16, 1
    %247 = vst [vmem:[%s243] sm:%s246] %v244
    %s248 = scalar_lea.vmem [#allocation18], 60
    %v249 = vpack.c.bf16 0.0, %v16
    %s251 = ssub.s32 16, 1
    %252 = vst [vmem:[%s248] sm:%s251] %v249
    %s253 = scalar_lea.vmem [#allocation18], 64
    %v254 = vpack.c.bf16 0.0, %v16
    %s256 = ssub.s32 16, 1
    %257 = vst [vmem:[%s253] sm:%s256] %v254
    %s258 = scalar_lea.vmem [#allocation18], 68
    %v259 = vpack.c.bf16 0.0, %v16
    %s261 = ssub.s32 16, 1
    %262 = vst [vmem:[%s258] sm:%s261] %v259
    %s263 = scalar_lea.vmem [#allocation18], 72
    %v264 = vpack.c.bf16 0.0, %v16
    %s266 = ssub.s32 16, 1
    %267 = vst [vmem:[%s263] sm:%s266] %v264
    %s268 = scalar_lea.vmem [#allocation18], 76
    %v269 = vpack.c.bf16 0.0, %v16
    %s271 = ssub.s32 16, 1
    %272 = vst [vmem:[%s268] sm:%s271] %v269
    %s273 = scalar_lea.vmem [#allocation18], 80
    %v274 = vpack.c.bf16 0.0, %v16
    %s276 = ssub.s32 16, 1
    %277 = vst [vmem:[%s273] sm:%s276] %v274
    %s278 = scalar_lea.vmem [#allocation18], 84
    %v279 = vpack.c.bf16 0.0, %v16
    %s281 = ssub.s32 16, 1
    %282 = vst [vmem:[%s278] sm:%s281] %v279
    %s283 = scalar_lea.vmem [#allocation18], 88
    %v284 = vpack.c.bf16 0.0, %v16
    %s286 = ssub.s32 16, 1
    %287 = vst [vmem:[%s283] sm:%s286] %v284
    %s288 = scalar_lea.vmem [#allocation18], 92
    %v289 = vpack.c.bf16 0.0, %v16
    %s291 = ssub.s32 16, 1
    %292 = vst [vmem:[%s288] sm:%s291] %v289
    %s293 = scalar_lea.vmem [#allocation18], 96
    %v294 = vpack.c.bf16 0.0, %v16
    %s296 = ssub.s32 16, 1
    %297 = vst [vmem:[%s293] sm:%s296] %v294
    %s298 = scalar_lea.vmem [#allocation18], 100
    %v299 = vpack.c.bf16 0.0, %v16
    %s301 = ssub.s32 16, 1
    %302 = vst [vmem:[%s298] sm:%s301] %v299
    %s303 = scalar_lea.vmem [#allocation18], 104
    %v304 = vpack.c.bf16 0.0, %v16
    %s306 = ssub.s32 16, 1
    %307 = vst [vmem:[%s303] sm:%s306] %v304
    %s308 = scalar_lea.vmem [#allocation18], 108
    %v309 = vpack.c.bf16 0.0, %v16
    %s311 = ssub.s32 16, 1
    %312 = vst [vmem:[%s308] sm:%s311] %v309
    %s313 = scalar_lea.vmem [#allocation18], 112
    %v314 = vpack.c.bf16 0.0, %v16
    %s316 = ssub.s32 16, 1
    %317 = vst [vmem:[%s313] sm:%s316] %v314
    %s318 = scalar_lea.vmem [#allocation18], 116
    %v319 = vpack.c.bf16 0.0, %v16
    %s321 = ssub.s32 16, 1
    %322 = vst [vmem:[%s318] sm:%s321] %v319
    %s323 = scalar_lea.vmem [#allocation18], 120
    %v324 = vpack.c.bf16 0.0, %v16
    %s326 = ssub.s32 16, 1
    %327 = vst [vmem:[%s323] sm:%s326] %v324
    %s328 = scalar_lea.vmem [#allocation18], 124
    %v329 = vpack.c.bf16 0.0, %v16
    %s331 = ssub.s32 16, 1
    %332 = vst [vmem:[%s328] sm:%s331] %v329
    %v333 = vld [vmem:[%s3] sm:$0x1]
    %v334 = vlaneseq
    %v335 = vshrl.u32 %v334, 7
    %vm337 = vcmp.lt.s32.totalorder %v335, 1
    %v338 = vsel %vm337, %v333, %v20
    %v339 = vlaneseq
    %v340 = vand.u32 %v339, 127
    %vm342 = vcmp.lt.s32.totalorder %v340, 32
    %v343 = vsel %vm342, %v338, %v20
    %s345 = ssub.s32 2, 1
    %346 = vst [vmem:[#allocation19] sm:%s345] %v343
    %v348 = vld [vmem:[#allocation17] sm:$0xff]
    %v349 = vld [vmem:[#allocation17 + $0x8] sm:$0xff]
    %v350 = vld [vmem:[#allocation18] sm:$0xff]
    %v351 = vld [vmem:[#allocation18 + $0x8] sm:$0xff]
    %v352 = vld [vmem:[#allocation18 + $0x10] sm:$0xff]
    %v353 = vld [vmem:[#allocation18 + $0x18] sm:$0xff]
    %v354 = vld [vmem:[#allocation18 + $0x20] sm:$0xff]
    %v355 = vld [vmem:[#allocation18 + $0x28] sm:$0xff]
    %v356 = vld [vmem:[#allocation18 + $0x30] sm:$0xff]
    %v357 = vld [vmem:[#allocation18 + $0x38] sm:$0xff]
    %v358 = vld [vmem:[#allocation18 + $0x40] sm:$0xff]
    %v359 = vld [vmem:[#allocation18 + $0x48] sm:$0xff]
    %v360 = vld [vmem:[#allocation18 + $0x50] sm:$0xff]
    %v361 = vld [vmem:[#allocation18 + $0x58] sm:$0xff]
    %v362 = vld [vmem:[#allocation18 + $0x60] sm:$0xff]
    %v363 = vld [vmem:[#allocation18 + $0x68] sm:$0xff]
    %v364 = vld [vmem:[#allocation18 + $0x70] sm:$0xff]
    %v365 = vld [vmem:[#allocation18 + $0x78] sm:$0xff]
    %v366 = vld [vmem:[#allocation19] sm:$0x1]
    %v368 = vlaneseq
    %v369 = vshrl.u32 %v368, 7
    %v370 = vsub.s32 0, %v369
    %v371 = vrot.slane %v366, %v370
    %v375 = vunpack.c.l.b16 %v348
    %v376 = vunpack.c.h.b16 %v348
    %v377 = vunpack.c.l.b16 %v349
    %v378 = vunpack.c.h.b16 %v349
    %v379 = vpack.c.b16 %v377, %v375
    %v380 = vpack.c.b16 %v378, %v376
    %v399 = vunpack.c.l.b16 %v350
    %v400 = vunpack.c.h.b16 %v350
    %v401 = vunpack.c.l.b16 %v351
    %v402 = vunpack.c.h.b16 %v351
    %v403 = vunpack.c.l.b16 %v352
    %v404 = vunpack.c.h.b16 %v352
    %v405 = vunpack.c.l.b16 %v353
    %v406 = vunpack.c.h.b16 %v353
    %v407 = vunpack.c.l.b16 %v354
    %v408 = vunpack.c.h.b16 %v354
    %v409 = vunpack.c.l.b16 %v355
    %v410 = vunpack.c.h.b16 %v355
    %v411 = vunpack.c.l.b16 %v356
    %v412 = vunpack.c.h.b16 %v356
    %v413 = vunpack.c.l.b16 %v357
    %v414 = vunpack.c.h.b16 %v357
    %v415 = vunpack.c.l.b16 %v358
    %v416 = vunpack.c.h.b16 %v358
    %v417 = vunpack.c.l.b16 %v359
    %v418 = vunpack.c.h.b16 %v359
    %v419 = vunpack.c.l.b16 %v360
    %v420 = vunpack.c.h.b16 %v360
    %v421 = vunpack.c.l.b16 %v361
    %v422 = vunpack.c.h.b16 %v361
    %v423 = vunpack.c.l.b16 %v362
    %v424 = vunpack.c.h.b16 %v362
    %v425 = vunpack.c.l.b16 %v363
    %v426 = vunpack.c.h.b16 %v363
    %v427 = vunpack.c.l.b16 %v364
    %v428 = vunpack.c.h.b16 %v364
    %v429 = vunpack.c.l.b16 %v365
    %v430 = vunpack.c.h.b16 %v365
    %v431 = vpack.c.b16 %v401, %v399
    %v432 = vpack.c.b16 %v402, %v400
    %v433 = vpack.c.b16 %v405, %v403
    %v434 = vpack.c.b16 %v406, %v404
    %v435 = vpack.c.b16 %v409, %v407
    %v436 = vpack.c.b16 %v410, %v408
    %v437 = vpack.c.b16 %v413, %v411
    %v438 = vpack.c.b16 %v414, %v412
    %v439 = vpack.c.b16 %v417, %v415
    %v440 = vpack.c.b16 %v418, %v416
    %v441 = vpack.c.b16 %v421, %v419
    %v442 = vpack.c.b16 %v422, %v420
    %v443 = vpack.c.b16 %v425, %v423
    %v444 = vpack.c.b16 %v426, %v424
    %v445 = vpack.c.b16 %v429, %v427
    %v446 = vpack.c.b16 %v430, %v428
    %463 = vmatprep.subr.bf16.mxu0 %v446
    %464 = vmatpush1.bf16.xpose.msra.mxu0 %v445
    %465 = vmatprep.subr.bf16.mxu0 %v444
    %466 = vmatpush1.bf16.xpose.msra.mxu0 %v443
    %467 = vmatprep.subr.bf16.mxu0 %v442
    %468 = vmatpush1.bf16.xpose.msra.mxu0 %v441
    %469 = vmatprep.subr.bf16.mxu0 %v440
    %470 = vmatpush1.bf16.xpose.msra.mxu0 %v439
    %471 = vmatprep.subr.bf16.mxu0 %v438
    %472 = vmatpush1.bf16.xpose.msra.mxu0 %v437
    %473 = vmatprep.subr.bf16.mxu0 %v436
    %474 = vmatpush1.bf16.xpose.msra.mxu0 %v435
    %475 = vmatprep.subr.bf16.mxu0 %v434
    %476 = vmatpush1.bf16.xpose.msra.mxu0 %v433
    %477 = vmatprep.subr.bf16.mxu0 %v432
    %478 = vmatpush1.bf16.xpose.msra.mxu0 %v431
    %479 = vmatprep.subr.bf16.mxu0 0
    %480 = vmatpush2.bf16.xpose.msra.mxu0 0
    %481 = vmatprep.subr.bf16.mxu0 0
    %482 = vmatpush2.bf16.xpose.msra.mxu0 0
    %483 = vmatprep.subr.bf16.mxu0 0
    %484 = vmatpush2.bf16.xpose.msra.mxu0 0
    %485 = vmatprep.subr.bf16.mxu0 0
    %486 = vmatpush2.bf16.xpose.msra.mxu0 0
    %487 = vmatprep.subr.bf16.mxu0 0
    %488 = vmatpush2.bf16.xpose.msra.mxu0 0
    %489 = vmatprep.subr.bf16.mxu0 0
    %490 = vmatpush2.bf16.xpose.msra.mxu0 0
    %491 = vmatprep.subr.bf16.mxu0 0
    %492 = vmatpush2.bf16.xpose.msra.mxu0 0
    %493 = vmatprep.subr.bf16.mxu0 0
    %494 = vmatpush2.bf16.xpose.msra.mxu0 0
    %495 = vmatprep.mubr.bf16.mxu0 %v380
    %496 = vmatmul.mubr.bf16.gmra.mxu0 %v379
    %v497 = vpop.f32.mrf.mxu0
    %v498 = vadd.f32 %v371, %v497
    %v499 = vpop.f32.mrf.mxu0
    %v500 = vpop.f32.mrf.mxu0
    %v501 = vadd.f32 %v371, %v500
    %v502 = vpop.f32.mrf.mxu0
    %503 = vdwg.mxu0
    %504 = vst [vmem:[%s5] sm:$0xff] %v498
    %505 = vst [vmem:[%s5 + $0x8] sm:$0xff] %v501
    // Predicated region
    $region14: #{_lambda_.2} parent=1 // pred_check
      _
    $region15: #{_lambda_.2} parent=1 // pred_check_branch
      %507 = sbr.rel (0) target = $region17
    $region16: #{_lambda_.2} parent=1 // pred_region
      _
    $region17: #{_lambda_.2} parent=1 // pred_fallthru
      _
    // Predicated region
    $region18: #{_lambda_.2} parent=1 // pred_check
      _
    $region19: #{_lambda_.2} parent=1 // pred_check_branch
      %509 = sbr.rel (0) target = $region21
    $region20: #{_lambda_.2} parent=1 // pred_region
      _
    $region21: #{_lambda_.2} parent=1 // pred_fallthru
      _

</llo_original>
